<compile_context>
chip_gen: v6e
topology: v6e:2x2x1
jax: 0.10.0
libtpu: 0.0.40
codegen_flags: <defaults>
</compile_context>

<pallas_src>
import functools

import jax
import jax.numpy as jnp
from jax.experimental import pallas as pl
from jax.experimental.pallas import tpu as pltpu

_LANES = 128
_SUBLANES = 8
_TARGET_TILE_BYTES = 1 * 1024 * 1024     # ~1 MiB input tile per grid step
_MAX_BLOCK_ROWS = 2048
_VMEM_LIMIT_BYTES = 32 * 1024 * 1024     # safe scoped VMEM on v5e/v6e/v7x


def _layernorm_plain_kernel(x_ref, gamma_ref, beta_ref, o_ref, *, eps, inv_f):
    # x_ref: (block_rows, F); gamma/beta: (1, F).  Used when F is not foldable
    # into 128 lanes (e.g. F is already a multiple of 128).
    x = x_ref[...].astype(jnp.float32)
    mean = jnp.sum(x, axis=-1, keepdims=True) * inv_f
    xc = x - mean                                        # reuse centered temp
    var = jnp.sum(xc * xc, axis=-1, keepdims=True) * inv_f
    x_hat = xc * jax.lax.rsqrt(var + eps)
    g = gamma_ref[...].astype(jnp.float32)
    b = beta_ref[...].astype(jnp.float32)
    o_ref[...] = (g * x_hat + b).astype(o_ref.dtype)


def _layernorm_folded_kernel(x_ref, seg_ref, gamma_ref, beta_ref, o_ref, *, eps, inv_f):
    # x_ref: (block_rows, 128) where each 128-lane row packs `fold = 128 // F`
    # logical rows of F features.  seg_ref is the (128, 128) block-diagonal
    # ones matrix: (x @ seg) yields per-segment sums broadcast back across each
    # segment in one MXU pass, keeping all loads/stores lane-dense.
    x = x_ref[...].astype(jnp.float32)
    seg = seg_ref[...]
    mean = jnp.dot(x, seg, preferred_element_type=jnp.float32) * inv_f
    xc = x - mean
    var = jnp.dot(xc * xc, seg, preferred_element_type=jnp.float32) * inv_f
    x_hat = xc * jax.lax.rsqrt(var + eps)
    g = gamma_ref[...].astype(jnp.float32)
    b = beta_ref[...].astype(jnp.float32)
    o_ref[...] = (g * x_hat + b).astype(o_ref.dtype)


def _choose_block_rows(total_rows, row_bytes):
    """Largest row tile <= ~1 MiB, multiple of 8 sublanes, capped at 2048 rows."""
    br = max(1, _TARGET_TILE_BYTES // max(1, row_bytes))
    br = min(int(br), _MAX_BLOCK_ROWS)
    br = max(_SUBLANES, (br // _SUBLANES) * _SUBLANES)
    if br >= total_rows:
        return total_rows            # single block == full extent (always legal)
    return br


def _compiler_params():
    return pltpu.CompilerParams(
        dimension_semantics=("parallel",),
        vmem_limit_bytes=_VMEM_LIMIT_BYTES,
    )


def layer_norm(x, gamma, beta, eps=1e-5):
    """LayerNorm over the last axis of `x` (any rank >= 1)."""
    orig_shape = x.shape
    num_features = orig_shape[-1]
    rows = 1
    for d in orig_shape[:-1]:
        rows *= d
    x2d = x.reshape(rows, num_features)
    itemsize = jnp.dtype(x.dtype).itemsize

    foldable = (num_features < _LANES) and (_LANES % num_features == 0)

    if foldable:
        fold = _LANES // num_features
        # Pad rows so they fold evenly into 128-lane vreg rows (zero rows are
        # numerically safe: var=0 -> rsqrt(eps) finite; they are sliced off).
        # In the common case rows % fold == 0 and no copy happens.
        rows_p = ((rows + fold - 1) // fold) * fold
        if rows_p != rows:
            x2d = jnp.pad(x2d, ((0, rows_p - rows), (0, 0)))
        rf = rows_p // fold
        xf = x2d.reshape(rf, _LANES)

        block_rows = _choose_block_rows(rf, _LANES * itemsize)

        # Block-diagonal ones matrix: seg[a, b] = 1 iff a // F == b // F.
        ia = jnp.arange(_LANES)
        seg = (ia[:, None] // num_features == ia[None, :] // num_features)
        seg = seg.astype(jnp.float32)
        gamma_f = jnp.tile(gamma.reshape(1, num_features).astype(jnp.float32), (1, fold))
        beta_f = jnp.tile(beta.reshape(1, num_features).astype(jnp.float32), (1, fold))

        grid = (pl.cdiv(rf, block_rows),)     # ragged last tile handled by Pallas
        out = pl.pallas_call(
            functools.partial(_layernorm_folded_kernel, eps=eps, inv_f=1.0 / num_features),
            out_shape=jax.ShapeDtypeStruct((rf, _LANES), x.dtype),
            grid_spec=pltpu.PrefetchScalarGridSpec(
                num_scalar_prefetch=0,
                grid=grid,
                in_specs=[
                    pl.BlockSpec((block_rows, _LANES), lambda i: (i, 0)),
                    pl.BlockSpec((_LANES, _LANES), lambda i: (0, 0)),
                    pl.BlockSpec((1, _LANES), lambda i: (0, 0)),
                    pl.BlockSpec((1, _LANES), lambda i: (0, 0)),
                ],
                out_specs=pl.BlockSpec((block_rows, _LANES), lambda i: (i, 0)),
            ),
            compiler_params=_compiler_params(),
        )(xf, seg, gamma_f, beta_f)
        out = out.reshape(rows_p, num_features)[:rows]
        return out.reshape(orig_shape)

    # Plain path: feature axis stays whole (block last dim == full array dim).
    block_rows = _choose_block_rows(rows, num_features * itemsize)
    gamma2d = gamma.reshape(1, num_features).astype(jnp.float32)
    beta2d = beta.reshape(1, num_features).astype(jnp.float32)

    grid = (pl.cdiv(rows, block_rows),)       # ragged last tile handled by Pallas
    out = pl.pallas_call(
        functools.partial(_layernorm_plain_kernel, eps=eps, inv_f=1.0 / num_features),
        out_shape=jax.ShapeDtypeStruct((rows, num_features), x.dtype),
        grid_spec=pltpu.PrefetchScalarGridSpec(
            num_scalar_prefetch=0,
            grid=grid,
            in_specs=[
                pl.BlockSpec((block_rows, num_features), lambda i: (i, 0)),
                pl.BlockSpec((1, num_features), lambda i: (0, 0)),
                pl.BlockSpec((1, num_features), lambda i: (0, 0)),
            ],
            out_specs=pl.BlockSpec((block_rows, num_features), lambda i: (i, 0)),
        ),
        compiler_params=_compiler_params(),
    )(x2d, gamma2d, beta2d)
    return out.reshape(orig_shape)


if __name__ == "__main__":
    # Module config: num_features = hidden = 32
    batch, seq, hidden = 2, 8, 32
    eps = 1e-5

    key = jax.random.PRNGKey(0)
    x = jax.random.normal(key, (batch, seq, hidden), dtype=jnp.float32)

    # Deterministic parameter init matching nn.Parameter defaults in __init__.
    gamma = jnp.ones((hidden,), dtype=jnp.float32)
    beta = jnp.zeros((hidden,), dtype=jnp.float32)

    out = layer_norm(x, gamma, beta, eps=eps)
    out = jax.block_until_ready(out)

    # Reference check in plain JAX (same math as the PyTorch forward).
    mean = jnp.mean(x, axis=-1, keepdims=True)
    var = jnp.mean((x - mean) ** 2, axis=-1, keepdims=True)
    ref = gamma * ((x - mean) / jnp.sqrt(var + eps)) + beta
    assert out.shape == x.shape
    assert jnp.allclose(out, ref, atol=1e-5, rtol=1e-5)

    print("KERNEL_OK")
</pallas_src>

<mosaic_0001>
module attributes {stable_mosaic.version = 11 : i64} {
  func.func @_layernorm_folded_kernel(%arg0: i32, %arg1: memref<4x128xf32, #tpu.memory_space<vmem>>, %arg2: memref<128x128xf32, #tpu.memory_space<vmem>>, %arg3: memref<1x128xf32, #tpu.memory_space<vmem>>, %arg4: memref<1x128xf32, #tpu.memory_space<vmem>>, %arg5: memref<4x128xf32, #tpu.memory_space<vmem>>) attributes {dimension_semantics = [#tpu.dimension_semantics<parallel>], iteration_bounds = array<i64: 1>, scalar_prefetch = 0 : i64, scratch_operands = 0 : i64, tpu.core_type = #tpu.core_type<tc>, window_params = [{transform_indices = @transform_0, window_bounds = array<i64: 4, 128>}, {pipeline_mode = #tpu.pipeline_mode<synchronous>, transform_indices = @transform_1, window_bounds = array<i64: 128, 128>}, {pipeline_mode = #tpu.pipeline_mode<synchronous>, transform_indices = @transform_2, window_bounds = array<i64: 1, 128>}, {pipeline_mode = #tpu.pipeline_mode<synchronous>, transform_indices = @transform_3, window_bounds = array<i64: 1, 128>}, {transform_indices = @transform_4, window_bounds = array<i64: 4, 128>}]} {
    %c0 = arith.constant 0 : index
    %c0_0 = arith.constant 0 : index
    %0 = vector.load %arg1[%c0, %c0_0] : memref<4x128xf32, #tpu.memory_space<vmem>>, vector<4x128xf32>
    %c0_1 = arith.constant 0 : index
    %c0_2 = arith.constant 0 : index
    %1 = vector.load %arg2[%c0_1, %c0_2] : memref<128x128xf32, #tpu.memory_space<vmem>>, vector<128x128xf32>
    %cst = arith.constant dense<0.000000e+00> : vector<4x128xf32>
    %2 = tpu.matmul %0, %1, %cst {dimension_numbers = #tpu.dot_dimension_numbers<[1], [0], [0], [1], [0, 0, 1, 1], [], []>} : vector<4x128xf32>, vector<128x128xf32>, vector<4x128xf32> -> vector<4x128xf32>
    %cst_3 = arith.constant 3.125000e-02 : f32
    %3 = vector.broadcast %cst_3 : f32 to vector<4x128xf32>
    %4 = arith.mulf %2, %3 : vector<4x128xf32>
    %5 = arith.subf %0, %4 : vector<4x128xf32>
    %6 = arith.mulf %5, %5 : vector<4x128xf32>
    %cst_4 = arith.constant dense<0.000000e+00> : vector<4x128xf32>
    %7 = tpu.matmul %6, %1, %cst_4 {dimension_numbers = #tpu.dot_dimension_numbers<[1], [0], [0], [1], [0, 0, 1, 1], [], []>} : vector<4x128xf32>, vector<128x128xf32>, vector<4x128xf32> -> vector<4x128xf32>
    %cst_5 = arith.constant 3.125000e-02 : f32
    %8 = vector.broadcast %cst_5 : f32 to vector<4x128xf32>
    %9 = arith.mulf %7, %8 : vector<4x128xf32>
    %cst_6 = arith.constant 9.99999974E-6 : f32
    %10 = vector.broadcast %cst_6 : f32 to vector<4x128xf32>
    %11 = arith.addf %9, %10 : vector<4x128xf32>
    %12 = math.rsqrt %11 : vector<4x128xf32>
    %13 = arith.mulf %5, %12 : vector<4x128xf32>
    %c0_7 = arith.constant 0 : index
    %c0_8 = arith.constant 0 : index
    %14 = vector.load %arg3[%c0_7, %c0_8] : memref<1x128xf32, #tpu.memory_space<vmem>>, vector<1x128xf32>
    %c0_9 = arith.constant 0 : index
    %c0_10 = arith.constant 0 : index
    %15 = vector.load %arg4[%c0_9, %c0_10] : memref<1x128xf32, #tpu.memory_space<vmem>>, vector<1x128xf32>
    %16 = vector.broadcast %14 : vector<1x128xf32> to vector<4x128xf32>
    %17 = arith.mulf %16, %13 : vector<4x128xf32>
    %18 = vector.broadcast %15 : vector<1x128xf32> to vector<4x128xf32>
    %19 = arith.addf %17, %18 : vector<4x128xf32>
    %c0_11 = arith.constant 0 : index
    %c0_12 = arith.constant 0 : index
    %20 = vector.load %arg5[%c0_11, %c0_12] : memref<4x128xf32, #tpu.memory_space<vmem>>, vector<4x128xf32>
    tpu.vector_store %arg5[%c0_11, %c0_12], %19 {strides = array<i32>} : memref<4x128xf32, #tpu.memory_space<vmem>>, vector<4x128xf32>,
    return
  }
  func.func @transform_0(%arg0: i32) -> (i32, i32) {
    %c0_i32 = arith.constant 0 : i32
    %c0_i32_0 = arith.constant 0 : i32
    return %arg0, %c0_i32 : i32, i32
  }
  func.func @transform_1(%arg0: i32) -> (i32, i32) {
    %c0_i32 = arith.constant 0 : i32
    %c0_i32_0 = arith.constant 0 : i32
    %c0_i32_1 = arith.constant 0 : i32
    return %c0_i32, %c0_i32_0 : i32, i32
  }
  func.func @transform_2(%arg0: i32) -> (i32, i32) {
    %c0_i32 = arith.constant 0 : i32
    %c0_i32_0 = arith.constant 0 : i32
    %c0_i32_1 = arith.constant 0 : i32
    return %c0_i32, %c0_i32_0 : i32, i32
  }
  func.func @transform_3(%arg0: i32) -> (i32, i32) {
    %c0_i32 = arith.constant 0 : i32
    %c0_i32_0 = arith.constant 0 : i32
    %c0_i32_1 = arith.constant 0 : i32
    return %c0_i32, %c0_i32_0 : i32, i32
  }
  func.func @transform_4(%arg0: i32) -> (i32, i32) {
    %c0_i32 = arith.constant 0 : i32
    %c0_i32_0 = arith.constant 0 : i32
    return %arg0, %c0_i32 : i32, i32
  }
}

</mosaic_0001>

<llo_original>
// kernel: tpu_custom_call.1
$region0: #{tpu_custom_call.1}
  #allocation0 [shape = 'u32[]', space=smem, size = 0x4, offset = 0x4, fixed_abs, tag = 'smem constant byte address 0x4 - core index']
  #allocation1 [shape = 'u32[144,128]{1,0:T(1,128)}', space=vmem, size = 0x12000, scoped, tag = 'internal scratch']
  %s0 = inlined_call_operand.hbm [shape: f32[4,128], index: 0, kind: input, shape index: {}]
  %s1 = inlined_call_operand.hbm [shape: f32[128,128], index: 1, kind: input, shape index: {}]
  %s2 = inlined_call_operand.vmem [shape: f32[1,128], index: 2, kind: input, shape index: {}]
  %s3 = inlined_call_operand.vmem [shape: f32[1,128], index: 3, kind: input, shape index: {}]
  %s4 = inlined_call_operand.hbm [shape: f32[4,128], index: 4, kind: output, shape index: {}]
  %s5 = sld [smem:[#allocation0]]
  $region34: #{tpu_custom_call.1} parent=0
    _
  %s7 = ssub.s32 1, %s5
  %s8 = scalar_select 0, %s7, %s5
  $region1: #{tpu_custom_call.1} parent=0
    #allocation2 [shape = 'u8[2048]{0}', space=vmem, size = 0x800, scoped, tag = 'input window, operand 0, single buffered']
    #allocation3 [shape = 's32[1]{0}', space=sflag, size = 0x4, scoped, tag = 'scoped memory for tpu_custom_call.1']
    #allocation4 [shape = 's32[1]{0}', space=sflag, size = 0x4, scoped, tag = 'scoped memory for tpu_custom_call.1']
    #allocation5 [shape = 'u8[65536]{0}', space=vmem, size = 0x10000, scoped, tag = 'input window, operand 1, single buffered']
    #allocation6 [shape = 's32[1]{0}', space=sflag, size = 0x4, scoped, tag = 'scoped memory for tpu_custom_call.1']
    #allocation7 [shape = 'u8[2048]{0}', space=vmem, size = 0x800, scoped, tag = 'output window, operand 0, single buffered']
    %9 = vsyncpa [#allocation3], 0
    %10 = vsyncpa [#allocation6], 0
    %11 = vsyncpa [#allocation4], 0
    // Predicated region
    $region2: #{tpu_custom_call.1} parent=1 // pred_check
      _
    $region3: #{tpu_custom_call.1} parent=1 // pred_check_branch
      %13 = sbr.rel (0) target = $region5
    $region4: #{tpu_custom_call.1} parent=1 // pred_region
      %s15 = ssub.s32 64, 64
      %16 = vsyncadd [#allocation3], %s15
      %s18 = sshll.u32 [#allocation2], 4
      %s19 = int_to_ptr.vmem [resolvable:$true] %s18
      %21 = dma.hbm_to_vmem [thread:$0]  %s0, 64, %s19, [#allocation3]
    $region5: #{tpu_custom_call.1} parent=1 // pred_fallthru
      _
    // Predicated region
    $region6: #{tpu_custom_call.1} parent=1 // pred_check
      _
    $region7: #{tpu_custom_call.1} parent=1 // pred_check_branch
      %23 = sbr.rel (0) target = $region9
    $region8: #{tpu_custom_call.1} parent=1 // pred_region
      %s25 = ssub.s32 2048, 2048
      %26 = vsyncadd [#allocation6], %s25
      %s27 = sshll.u32 [#allocation5], 4
      %s28 = int_to_ptr.vmem [resolvable:$true] %s27
      %33 = dma.hbm_to_vmem [thread:$0]  %s1, 2048, %s28, [#allocation6], 128, 128, 8
    $region9: #{tpu_custom_call.1} parent=1 // pred_fallthru
      _
    // Predicated region
    $region10: #{tpu_custom_call.1} parent=1 // pred_check
      _
    $region11: #{tpu_custom_call.1} parent=1 // pred_check_branch
      %35 = sbr.rel (0) target = $region13
    $region12: #{tpu_custom_call.1} parent=1 // pred_region
      _
    $region13: #{tpu_custom_call.1} parent=1 // pred_fallthru
      _
    // Predicated region
    $region14: #{tpu_custom_call.1} parent=1 // pred_check
      _
    $region15: #{tpu_custom_call.1} parent=1 // pred_check_branch
      %37 = sbr.rel (0) target = $region17
    $region16: #{tpu_custom_call.1} parent=1 // pred_region
      _
    $region17: #{tpu_custom_call.1} parent=1 // pred_fallthru
      _
    // Predicated region
    $region18: #{tpu_custom_call.1} parent=1 // pred_check
      _
    $region19: #{tpu_custom_call.1} parent=1 // pred_check_branch
      %39 = sbr.rel (0) target = $region21
    $region20: #{tpu_custom_call.1} parent=1 // pred_region
      %40 = dma.done [#allocation3], 64
    $region21: #{tpu_custom_call.1} parent=1 // pred_fallthru
      _
    // Predicated region
    $region22: #{tpu_custom_call.1} parent=1 // pred_check
      _
    $region23: #{tpu_custom_call.1} parent=1 // pred_check_branch
      %42 = sbr.rel (0) target = $region25
    $region24: #{tpu_custom_call.1} parent=1 // pred_region
      %43 = dma.done [#allocation6], 2048
    $region25: #{tpu_custom_call.1} parent=1 // pred_fallthru
      _
    %v44 = vld [vmem:[#allocation2] sm:$0xf]
    %v45 = vld [vmem:[#allocation5] sm:$0xff]
    %v46 = vld [vmem:[#allocation5 + $0x8] sm:$0xff]
    %v47 = vld [vmem:[#allocation5 + $0x10] sm:$0xff]
    %v48 = vld [vmem:[#allocation5 + $0x18] sm:$0xff]
    %v49 = vld [vmem:[#allocation5 + $0x20] sm:$0xff]
    %v50 = vld [vmem:[#allocation5 + $0x28] sm:$0xff]
    %v51 = vld [vmem:[#allocation5 + $0x30] sm:$0xff]
    %v52 = vld [vmem:[#allocation5 + $0x38] sm:$0xff]
    %v53 = vld [vmem:[#allocation5 + $0x40] sm:$0xff]
    %v54 = vld [vmem:[#allocation5 + $0x48] sm:$0xff]
    %v55 = vld [vmem:[#allocation5 + $0x50] sm:$0xff]
    %v56 = vld [vmem:[#allocation5 + $0x58] sm:$0xff]
    %v57 = vld [vmem:[#allocation5 + $0x60] sm:$0xff]
    %v58 = vld [vmem:[#allocation5 + $0x68] sm:$0xff]
    %v59 = vld [vmem:[#allocation5 + $0x70] sm:$0xff]
    %v60 = vld [vmem:[#allocation5 + $0x78] sm:$0xff]
    %61 = vmatprep.subr.mxu0 0.0
    %62 = vmatpush1.msra.mxu0 %v60
    %63 = vmatprep.subr.mxu0 0.0
    %64 = vmatpush1.msra.mxu0 %v59
    %65 = vmatprep.subr.mxu0 0.0
    %66 = vmatpush1.msra.mxu0 %v58
    %67 = vmatprep.subr.mxu0 0.0
    %68 = vmatpush1.msra.mxu0 %v57
    %69 = vmatprep.subr.mxu0 0.0
    %70 = vmatpush1.msra.mxu0 %v56
    %71 = vmatprep.subr.mxu0 0.0
    %72 = vmatpush1.msra.mxu0 %v55
    %73 = vmatprep.subr.mxu0 0.0
    %74 = vmatpush1.msra.mxu0 %v54
    %75 = vmatprep.subr.mxu0 0.0
    %76 = vmatpush1.msra.mxu0 %v53
    %77 = vmatprep.subr.mxu0 0.0
    %78 = vmatpush1.msra.mxu0 %v52
    %79 = vmatprep.subr.mxu0 0.0
    %80 = vmatpush1.msra.mxu0 %v51
    %81 = vmatprep.subr.mxu0 0.0
    %82 = vmatpush1.msra.mxu0 %v50
    %83 = vmatprep.subr.mxu0 0.0
    %84 = vmatpush1.msra.mxu0 %v49
    %85 = vmatprep.subr.mxu0 0.0
    %86 = vmatpush1.msra.mxu0 %v48
    %87 = vmatprep.subr.mxu0 0.0
    %88 = vmatpush1.msra.mxu0 %v47
    %89 = vmatprep.subr.mxu0 0.0
    %90 = vmatpush1.msra.mxu0 %v46
    %91 = vmatprep.subr.mxu0 0.0
    %92 = vmatpush1.msra.mxu0 %v45
    %93 = vmatprep.subr.mxu0 0.0
    %94 = vmatpush2.msra.mxu0 0.0
    %95 = vmatprep.subr.mxu0 0.0
    %96 = vmatpush2.msra.mxu0 0.0
    %97 = vmatprep.subr.mxu0 0.0
    %98 = vmatpush2.msra.mxu0 0.0
    %99 = vmatprep.subr.mxu0 0.0
    %100 = vmatpush2.msra.mxu0 0.0
    %101 = vmatprep.subr.mxu0 0.0
    %102 = vmatpush2.msra.mxu0 0.0
    %103 = vmatprep.subr.mxu0 0.0
    %104 = vmatpush2.msra.mxu0 0.0
    %105 = vmatprep.subr.mxu0 0.0
    %106 = vmatpush2.msra.mxu0 0.0
    %107 = vmatprep.subr.mxu0 0.0
    %108 = vmatpush2.msra.mxu0 0.0
    %109 = vmatprep.subr.mxu0 0.0
    %110 = vmatpush2.msra.mxu0 0.0
    %111 = vmatprep.subr.mxu0 0.0
    %112 = vmatpush2.msra.mxu0 0.0
    %113 = vmatprep.subr.mxu0 0.0
    %114 = vmatpush2.msra.mxu0 0.0
    %115 = vmatprep.subr.mxu0 0.0
    %116 = vmatpush2.msra.mxu0 0.0
    %117 = vmatprep.subr.mxu0 0.0
    %118 = vmatpush2.msra.mxu0 0.0
    %119 = vmatprep.subr.mxu0 0.0
    %120 = vmatpush2.msra.mxu0 0.0
    %121 = vmatprep.subr.mxu0 0.0
    %122 = vmatpush2.msra.mxu0 0.0
    %123 = vmatprep.subr.mxu0 0.0
    %124 = vmatpush2.msra.mxu0 0.0
    %125 = vmatprep.mubr.f32.mxu0 0.0
    %126 = vmatmul.mubr.f32.gmra.mxu0 %v44
    %v127 = vpop.f32.mrf.mxu0
    %v128 = vadd.f32 0.0, %v127
    %v129 = vpop.f32.mrf.mxu0
    %130 = vdwg.mxu0
    %v131 = vmul.f32 %v128, 0.03125
    %v132 = vsub.f32 %v44, %v131
    %v133 = vmul.f32 %v132, %v132
    %134 = vmatprep.subr.mxu0 0.0
    %135 = vmatpush1.msra.mxu0 %v60
    %136 = vmatprep.subr.mxu0 0.0
    %137 = vmatpush1.msra.mxu0 %v59
    %138 = vmatprep.subr.mxu0 0.0
    %139 = vmatpush1.msra.mxu0 %v58
    %140 = vmatprep.subr.mxu0 0.0
    %141 = vmatpush1.msra.mxu0 %v57
    %142 = vmatprep.subr.mxu0 0.0
    %143 = vmatpush1.msra.mxu0 %v56
    %144 = vmatprep.subr.mxu0 0.0
    %145 = vmatpush1.msra.mxu0 %v55
    %146 = vmatprep.subr.mxu0 0.0
    %147 = vmatpush1.msra.mxu0 %v54
    %148 = vmatprep.subr.mxu0 0.0
    %149 = vmatpush1.msra.mxu0 %v53
    %150 = vmatprep.subr.mxu0 0.0
    %151 = vmatpush1.msra.mxu0 %v52
    %152 = vmatprep.subr.mxu0 0.0
    %153 = vmatpush1.msra.mxu0 %v51
    %154 = vmatprep.subr.mxu0 0.0
    %155 = vmatpush1.msra.mxu0 %v50
    %156 = vmatprep.subr.mxu0 0.0
    %157 = vmatpush1.msra.mxu0 %v49
    %158 = vmatprep.subr.mxu0 0.0
    %159 = vmatpush1.msra.mxu0 %v48
    %160 = vmatprep.subr.mxu0 0.0
    %161 = vmatpush1.msra.mxu0 %v47
    %162 = vmatprep.subr.mxu0 0.0
    %163 = vmatpush1.msra.mxu0 %v46
    %164 = vmatprep.subr.mxu0 0.0
    %165 = vmatpush1.msra.mxu0 %v45
    %166 = vmatprep.subr.mxu0 0.0
    %167 = vmatpush2.msra.mxu0 0.0
    %168 = vmatprep.subr.mxu0 0.0
    %169 = vmatpush2.msra.mxu0 0.0
    %170 = vmatprep.subr.mxu0 0.0
    %171 = vmatpush2.msra.mxu0 0.0
    %172 = vmatprep.subr.mxu0 0.0
    %173 = vmatpush2.msra.mxu0 0.0
    %174 = vmatprep.subr.mxu0 0.0
    %175 = vmatpush2.msra.mxu0 0.0
    %176 = vmatprep.subr.mxu0 0.0
    %177 = vmatpush2.msra.mxu0 0.0
    %178 = vmatprep.subr.mxu0 0.0
    %179 = vmatpush2.msra.mxu0 0.0
    %180 = vmatprep.subr.mxu0 0.0
    %181 = vmatpush2.msra.mxu0 0.0
    %182 = vmatprep.subr.mxu0 0.0
    %183 = vmatpush2.msra.mxu0 0.0
    %184 = vmatprep.subr.mxu0 0.0
    %185 = vmatpush2.msra.mxu0 0.0
    %186 = vmatprep.subr.mxu0 0.0
    %187 = vmatpush2.msra.mxu0 0.0
    %188 = vmatprep.subr.mxu0 0.0
    %189 = vmatpush2.msra.mxu0 0.0
    %190 = vmatprep.subr.mxu0 0.0
    %191 = vmatpush2.msra.mxu0 0.0
    %192 = vmatprep.subr.mxu0 0.0
    %193 = vmatpush2.msra.mxu0 0.0
    %194 = vmatprep.subr.mxu0 0.0
    %195 = vmatpush2.msra.mxu0 0.0
    %196 = vmatprep.subr.mxu0 0.0
    %197 = vmatpush2.msra.mxu0 0.0
    %198 = vmatprep.mubr.f32.mxu0 0.0
    %199 = vmatmul.mubr.f32.gmra.mxu0 %v133
    %v200 = vpop.f32.mrf.mxu0
    %v201 = vadd.f32 0.0, %v200
    %v202 = vpop.f32.mrf.mxu0
    %203 = vdwg.mxu0
    %v204 = vmul.f32 %v201, 0.03125
    %v205 = vadd.f32 %v204, 1e-05
    %v206 = vrsqrt.pop %v205
    %v207 = vmul.f32 %v132, %v206
    %v208 = vld [vmem:[%s2] sm:$0x1]
    %v209 = vld [vmem:[%s3] sm:$0x1]
    %v211 = vlaneseq
    %v212 = vshrl.u32 %v211, 7
    %v213 = vsub.s32 0, %v212
    %v214 = vrot.slane %v208, %v213
    %v216 = vmul.f32 %v214, %v207
    %v218 = vlaneseq
    %v219 = vshrl.u32 %v218, 7
    %v220 = vsub.s32 0, %v219
    %v221 = vrot.slane %v209, %v220
    %v223 = vadd.f32 %v216, %v221
    %224 = vst [vmem:[#allocation7] sm:$0xf] %v223
    // Predicated region
    $region26: #{tpu_custom_call.1} parent=1 // pred_check
      _
    $region27: #{tpu_custom_call.1} parent=1 // pred_check_branch
      %226 = sbr.rel (0) target = $region29
    $region28: #{tpu_custom_call.1} parent=1 // pred_region
      %s228 = ssub.s32 64, 64
      %229 = vsyncadd [#allocation4], %s228
      %s231 = sshll.u32 [#allocation7], 4
      %s232 = int_to_ptr.vmem [resolvable:$true] %s231
      %234 = dma.vmem_to_hbm [thread:$0]  %s232, 64, %s4, [#allocation4]
    $region29: #{tpu_custom_call.1} parent=1 // pred_fallthru
      _
    // Predicated region
    $region30: #{tpu_custom_call.1} parent=1 // pred_check
      _
    $region31: #{tpu_custom_call.1} parent=1 // pred_check_branch
      %236 = sbr.rel (0) target = $region33
    $region32: #{tpu_custom_call.1} parent=1 // pred_region
      %237 = dma.done [#allocation4], 64
    $region33: #{tpu_custom_call.1} parent=1 // pred_fallthru
      _
    %238 = vsyncpa [#allocation3], 1
    %239 = vsyncpa [#allocation6], 1
    %240 = vsyncpa [#allocation4], 1

</llo_original>
